<compile_context>
chip_gen: v5e
topology: v5e:2x2
jax: 0.10.0
libtpu: 0.0.40
codegen_flags: <defaults>
</compile_context>

<pallas_src>
import numpy as np
import jax
import jax.numpy as jnp
from jax import lax
from jax.experimental import pallas as pl
from jax.experimental.pallas import tpu as pltpu

_NEG_BIG = -1e30              # exp(-1e30) == 0.0 in f32 -> masked lanes contribute nothing
_MAX_BLOCK_BYTES = 8 * 2**20  # x+t bytes per (single) buffer; 2x-buffered stays <= 16 MiB


# ----------------------------- Pallas kernel --------------------------------

def _make_kernel(class_num, hw_valid, need_mask, groups, acc_rows):
    rows = groups * acc_rows

    def kernel(x_ref, t_ref, se_ref, st_ref, si_ref):
        """x_ref: (C, rows, 128) logits tile (native dtype), t_ref: (rows, 128) int32.

        se/st/si_ref: (C, acc_rows, 128) f32 lane-parallel resident accumulators
        (sum(exp), sum(target==c), sum(exp * (target==c))).
        """
        s = pl.program_id(1)

        @pl.when(s == 0)
        def _init():
            se_ref[...] = jnp.zeros_like(se_ref)
            st_ref[...] = jnp.zeros_like(st_ref)
            si_ref[...] = jnp.zeros_like(si_ref)

        t = t_ref[...]                                           # (rows, 128) int32

        if need_mask:
            # Ragged last block / partial last 128-row: mask by flat element index.
            row0 = s * rows
            lrow = lax.broadcasted_iota(jnp.int32, (rows, 128), 0)
            lane = lax.broadcasted_iota(jnp.int32, (rows, 128), 1)
            valid = (row0 + lrow) * 128 + lane < hw_valid
        else:
            valid = None

        # Channel 0 is never used by the loss -> skip its exp/compare work.
        for c in range(1, class_num):
            xc = x_ref[c].astype(jnp.float32)                    # (rows, 128)
            if valid is not None:
                xc = jnp.where(valid, xc, _NEG_BIG)
            exc = jnp.exp(xc)                                    # EUP
            mc = t == c                                          # VPU int compare
            if valid is not None:
                mc = jnp.logical_and(mc, valid)
            mcf = mc.astype(jnp.float32)
            inter = exc * mcf

            # Lane/sublane-parallel accumulation (pure VPU adds); the final
            # cross-lane reduce happens once in the tiny JAX epilogue.
            se_ref[c] += jnp.sum(exc.reshape(groups, acc_rows, 128), axis=0)
            st_ref[c] += jnp.sum(mcf.reshape(groups, acc_rows, 128), axis=0)
            si_ref[c] += jnp.sum(inter.reshape(groups, acc_rows, 128), axis=0)

    return kernel


# ------------------------------- wrapper -------------------------------------

def el_dice_loss(logits, target, class_num=4, gamma=0.5, tile_lanes=131072):
    """Pallas implementation of EL_DiceLoss.forward(logits, target)."""
    B, C, H, W = logits.shape
    assert 1 < class_num <= C, "input channels must cover class_num"
    HW = H * W
    R = pl.cdiv(HW, 128)                        # 128-lane rows of the spatial axis

    x = logits.reshape(B, C, HW)                # free: row-major split/merge only
    t = target.reshape(B, HW).astype(jnp.int32)  # tiny array; no-op if already int32

    pad = R * 128 - HW
    if pad:
        # TODO(synk): this <128-element pad still re-materializes x once in HBM;
        # a flat lane-masked layout would avoid it at the cost of sublane density.
        x = jnp.pad(x, ((0, 0), (0, 0), (0, pad)))
        t = jnp.pad(t, ((0, 0), (0, pad)), constant_values=-1)
    x = x.reshape(B, C, R, 128)
    t = t.reshape(B, R, 128)

    # --- spatial tile: sublane-dense (multiple of 8 rows), VMEM-capped ---
    x_item = jnp.dtype(x.dtype).itemsize
    bytes_per_row = 128 * (C * x_item + 4)
    cap_rows = max(8, (_MAX_BLOCK_BYTES // bytes_per_row) // 8 * 8)
    target_rows = max(8, (tile_lanes // 128) // 8 * 8)
    rows_tile = min(R, target_rows, cap_rows)
    if rows_tile < R:
        rows_tile = max(8, rows_tile // 8 * 8)   # must be a multiple of 8 unless == R
    S = pl.cdiv(R, rows_tile)
    acc_rows = 8 if rows_tile % 8 == 0 else rows_tile
    groups = rows_tile // acc_rows
    need_mask = (pad != 0) or (R % rows_tile != 0)

    x_block_bytes = C * rows_tile * 128 * x_item
    t_block_bytes = rows_tile * 128 * 4
    acc_bytes = 3 * C * acc_rows * 128 * 4
    vmem_need = 2 * (x_block_bytes + t_block_bytes) + 2 * acc_bytes
    vmem_limit = int(min(64 * 2**20, max(32 * 2**20, 2 * vmem_need)))

    cost = pl.CostEstimate(
        flops=int(3 * B * (class_num - 1) * HW),
        transcendentals=int(B * (class_num - 1) * HW),
        bytes_accessed=int(x.size * x_item + t.size * 4 + B * acc_bytes),
    )

    kernel = _make_kernel(class_num, HW, need_mask, groups, acc_rows)

    # TODO(synk): when B == 1 on v7x, add a 2-way parallel split of the spatial
    # range (with separate per-core accumulators) so both TensorCores are used.
    sum_exp, sum_tgt, sum_int = pl.pallas_call(
        kernel,
        grid=(B, S),
        in_specs=[
            pl.BlockSpec((None, C, rows_tile, 128), lambda b, s: (b, 0, s, 0)),
            pl.BlockSpec((None, rows_tile, 128), lambda b, s: (b, s, 0)),
        ],
        out_specs=[
            pl.BlockSpec((None, C, acc_rows, 128), lambda b, s: (b, 0, 0, 0)),
            pl.BlockSpec((None, C, acc_rows, 128), lambda b, s: (b, 0, 0, 0)),
            pl.BlockSpec((None, C, acc_rows, 128), lambda b, s: (b, 0, 0, 0)),
        ],
        out_shape=[jax.ShapeDtypeStruct((B, C, acc_rows, 128), jnp.float32)] * 3,
        compiler_params=pltpu.CompilerParams(
            dimension_semantics=("parallel", "arbitrary"),
            vmem_limit_bytes=vmem_limit),
        cost_estimate=cost,
    )(x, t)

    # Tiny epilogue: reduce the lane-dense accumulators and form the loss.
    se = jnp.sum(sum_exp, axis=(0, 2, 3))[1:class_num]
    st = jnp.sum(sum_tgt, axis=(0, 2, 3))[1:class_num]
    si = jnp.sum(sum_int, axis=(0, 2, 3))[1:class_num]

    smooth = 0.0  # forward() overrides the constructor's smooth with 0.0
    dice = jnp.where(st == 0.0, 1.0, (2.0 * si + smooth) / (se + st + smooth))
    loss = jnp.sum((-jnp.log(dice)) ** gamma) / (class_num - 1)
    return loss.reshape(1).astype(jnp.float32)


# --------------------------- reference (pure JAX) -----------------------------

def el_dice_loss_ref(logits, target, class_num=4, gamma=0.5):
    x = jnp.exp(logits.astype(jnp.float32))
    smooth = 0.0
    dice_sum = jnp.zeros((1,), jnp.float32)
    for i in range(1, class_num):
        xi = x[:, i, :, :]
        ti = (target == i).astype(jnp.float32)
        intersect = jnp.sum(xi * ti)
        union = jnp.sum(xi) + jnp.sum(ti)
        dice = jnp.where(jnp.sum(ti) == 0.0, 1.0,
                         (2.0 * intersect + smooth) / (union + smooth))
        dice_sum = dice_sum + (-jnp.log(dice)) ** gamma
    return dice_sum / (class_num - 1)


# --------------------------------- main ---------------------------------------

if __name__ == "__main__":
    key = jax.random.PRNGKey(0)

    def check(B, C, H, W, tile_lanes):
        kx, kt = jax.random.split(jax.random.fold_in(key, H * W + B))
        logits = jax.random.normal(kx, (B, C, H, W), jnp.float32)
        target = jax.random.randint(kt, (B, H, W), 0, C)      # int32 labels
        out = jax.block_until_ready(
            el_dice_loss(logits, target, class_num=C, tile_lanes=tile_lanes))
        ref = jax.block_until_ready(el_dice_loss_ref(logits, target, class_num=C))
        np.testing.assert_allclose(np.asarray(out), np.asarray(ref),
                                   rtol=1e-5, atol=1e-6)

    # Canonical small shape: single spatial step per batch, batch-parallel grid.
    check(2, 4, 16, 16, 131072)
    # Multi-step spatial reduction + ragged last block (18 rows, tile 8) + B == 1.
    check(1, 4, 48, 48, 1024)
    # H*W not a multiple of 128 -> minimal pad + in-kernel flat-index masking.
    check(1, 4, 15, 15, 131072)

    print("KERNEL_OK")
</pallas_src>

<mosaic_0001>
module attributes {stable_mosaic.version = 11 : i64} {
  func.func @kernel(%arg0: i32, %arg1: i32, %arg2: memref<1x4x2x128xf32, #tpu.memory_space<vmem>>, %arg3: memref<1x2x128xi32, #tpu.memory_space<vmem>>, %arg4: memref<1x4x2x128xf32, #tpu.memory_space<vmem>>, %arg5: memref<1x4x2x128xf32, #tpu.memory_space<vmem>>, %arg6: memref<1x4x2x128xf32, #tpu.memory_space<vmem>>) attributes {dimension_semantics = [#tpu.dimension_semantics<parallel>, #tpu.dimension_semantics<arbitrary>], iteration_bounds = array<i64: 2, 1>, scalar_prefetch = 0 : i64, scratch_operands = 0 : i64, tpu.core_type = #tpu.core_type<tc>, window_params = [{transform_indices = @transform_0, window_bounds = array<i64: 1, 4, 2, 128>}, {transform_indices = @transform_1, window_bounds = array<i64: 1, 2, 128>}, {transform_indices = @transform_2, window_bounds = array<i64: 1, 4, 2, 128>}, {transform_indices = @transform_3, window_bounds = array<i64: 1, 4, 2, 128>}, {transform_indices = @transform_4, window_bounds = array<i64: 1, 4, 2, 128>}]} {
    %c0_i32 = arith.constant 0 : i32
    %0 = arith.cmpi eq, %arg1, %c0_i32 : i32
    %1 = arith.extui %0 : i1 to i32
    %c0_i32_0 = arith.constant 0 : i32
    %2 = arith.cmpi ne, %1, %c0_i32_0 : i32
    scf.if %2 {
      %cst_92 = arith.constant 0.000000e+00 : f32
      %101 = vector.broadcast %cst_92 : f32 to vector<4x2x128xf32>
      %c0_93 = arith.constant 0 : index
      %c0_94 = arith.constant 0 : index
      %c0_95 = arith.constant 0 : index
      %c0_96 = arith.constant 0 : index
      %102 = vector.load %arg4[%c0_93, %c0_94, %c0_95, %c0_96] : memref<1x4x2x128xf32, #tpu.memory_space<vmem>>, vector<1x4x2x128xf32>
      %103 = vector.shape_cast %102 : vector<1x4x2x128xf32> to vector<4x2x128xf32>
      %104 = vector.shape_cast %101 : vector<4x2x128xf32> to vector<1x4x2x128xf32>
      tpu.vector_store %arg4[%c0_93, %c0_94, %c0_95, %c0_96], %104 {strides = array<i32>} : memref<1x4x2x128xf32, #tpu.memory_space<vmem>>, vector<1x4x2x128xf32>,
      %cst_97 = arith.constant 0.000000e+00 : f32
      %105 = vector.broadcast %cst_97 : f32 to vector<4x2x128xf32>
      %c0_98 = arith.constant 0 : index
      %c0_99 = arith.constant 0 : index
      %c0_100 = arith.constant 0 : index
      %c0_101 = arith.constant 0 : index
      %106 = vector.load %arg5[%c0_98, %c0_99, %c0_100, %c0_101] : memref<1x4x2x128xf32, #tpu.memory_space<vmem>>, vector<1x4x2x128xf32>
      %107 = vector.shape_cast %106 : vector<1x4x2x128xf32> to vector<4x2x128xf32>
      %108 = vector.shape_cast %105 : vector<4x2x128xf32> to vector<1x4x2x128xf32>
      tpu.vector_store %arg5[%c0_98, %c0_99, %c0_100, %c0_101], %108 {strides = array<i32>} : memref<1x4x2x128xf32, #tpu.memory_space<vmem>>, vector<1x4x2x128xf32>,
      %cst_102 = arith.constant 0.000000e+00 : f32
      %109 = vector.broadcast %cst_102 : f32 to vector<4x2x128xf32>
      %c0_103 = arith.constant 0 : index
      %c0_104 = arith.constant 0 : index
      %c0_105 = arith.constant 0 : index
      %c0_106 = arith.constant 0 : index
      %110 = vector.load %arg6[%c0_103, %c0_104, %c0_105, %c0_106] : memref<1x4x2x128xf32, #tpu.memory_space<vmem>>, vector<1x4x2x128xf32>
      %111 = vector.shape_cast %110 : vector<1x4x2x128xf32> to vector<4x2x128xf32>
      %112 = vector.shape_cast %109 : vector<4x2x128xf32> to vector<1x4x2x128xf32>
      tpu.vector_store %arg6[%c0_103, %c0_104, %c0_105, %c0_106], %112 {strides = array<i32>} : memref<1x4x2x128xf32, #tpu.memory_space<vmem>>, vector<1x4x2x128xf32>,
    } else {
    }
    %c0 = arith.constant 0 : index
    %c0_1 = arith.constant 0 : index
    %c0_2 = arith.constant 0 : index
    %3 = vector.load %arg3[%c0, %c0_1, %c0_2] : memref<1x2x128xi32, #tpu.memory_space<vmem>>, vector<1x2x128xi32>
    %4 = vector.shape_cast %3 : vector<1x2x128xi32> to vector<2x128xi32>
    %c0_3 = arith.constant 0 : index
    %c1 = arith.constant 1 : index
    %c0_4 = arith.constant 0 : index
    %c0_5 = arith.constant 0 : index
    %5 = vector.load %arg2[%c0_3, %c1, %c0_4, %c0_5] : memref<1x4x2x128xf32, #tpu.memory_space<vmem>>, vector<1x1x2x128xf32>
    %6 = vector.shape_cast %5 : vector<1x1x2x128xf32> to vector<2x128xf32>
    %7 = math.exp %6 : vector<2x128xf32>
    %c1_i32 = arith.constant 1 : i32
    %8 = vector.broadcast %c1_i32 : i32 to vector<2x128xi32>
    %9 = arith.cmpi eq, %4, %8 : vector<2x128xi32>
    %10 = arith.extui %9 : vector<2x128xi1> to vector<2x128xi32>
    %11 = arith.sitofp %10 : vector<2x128xi32> to vector<2x128xf32>
    %12 = arith.mulf %7, %11 : vector<2x128xf32>
    %c0_6 = arith.constant 0 : index
    %c1_7 = arith.constant 1 : index
    %c0_8 = arith.constant 0 : index
    %c0_9 = arith.constant 0 : index
    %13 = vector.load %arg4[%c0_6, %c1_7, %c0_8, %c0_9] : memref<1x4x2x128xf32, #tpu.memory_space<vmem>>, vector<1x1x2x128xf32>
    %14 = vector.shape_cast %13 : vector<1x1x2x128xf32> to vector<2x128xf32>
    %15 = vector.shape_cast %7 : vector<2x128xf32> to vector<1x2x128xf32>
    %cst = arith.constant dense<0.000000e+00> : vector<2x128xf32>
    %16 = vector.multi_reduction <add>, %15, %cst [0] : vector<1x2x128xf32> to vector<2x128xf32>
    %17 = arith.addf %14, %16 : vector<2x128xf32>
    %c0_10 = arith.constant 0 : index
    %c1_11 = arith.constant 1 : index
    %c0_12 = arith.constant 0 : index
    %c0_13 = arith.constant 0 : index
    %18 = vector.load %arg4[%c0_10, %c1_11, %c0_12, %c0_13] : memref<1x4x2x128xf32, #tpu.memory_space<vmem>>, vector<1x1x2x128xf32>
    %19 = vector.shape_cast %18 : vector<1x1x2x128xf32> to vector<2x128xf32>
    %20 = vector.shape_cast %17 : vector<2x128xf32> to vector<1x1x2x128xf32>
    tpu.vector_store %arg4[%c0_10, %c1_11, %c0_12, %c0_13], %20 {strides = array<i32>} : memref<1x4x2x128xf32, #tpu.memory_space<vmem>>, vector<1x1x2x128xf32>,
    %c0_14 = arith.constant 0 : index
    %c1_15 = arith.constant 1 : index
    %c0_16 = arith.constant 0 : index
    %c0_17 = arith.constant 0 : index
    %21 = vector.load %arg5[%c0_14, %c1_15, %c0_16, %c0_17] : memref<1x4x2x128xf32, #tpu.memory_space<vmem>>, vector<1x1x2x128xf32>
    %22 = vector.shape_cast %21 : vector<1x1x2x128xf32> to vector<2x128xf32>
    %23 = vector.shape_cast %11 : vector<2x128xf32> to vector<1x2x128xf32>
    %cst_18 = arith.constant dense<0.000000e+00> : vector<2x128xf32>
    %24 = vector.multi_reduction <add>, %23, %cst_18 [0] : vector<1x2x128xf32> to vector<2x128xf32>
    %25 = arith.addf %22, %24 : vector<2x128xf32>
    %c0_19 = arith.constant 0 : index
    %c1_20 = arith.constant 1 : index
    %c0_21 = arith.constant 0 : index
    %c0_22 = arith.constant 0 : index
    %26 = vector.load %arg5[%c0_19, %c1_20, %c0_21, %c0_22] : memref<1x4x2x128xf32, #tpu.memory_space<vmem>>, vector<1x1x2x128xf32>
    %27 = vector.shape_cast %26 : vector<1x1x2x128xf32> to vector<2x128xf32>
    %28 = vector.shape_cast %25 : vector<2x128xf32> to vector<1x1x2x128xf32>
    tpu.vector_store %arg5[%c0_19, %c1_20, %c0_21, %c0_22], %28 {strides = array<i32>} : memref<1x4x2x128xf32, #tpu.memory_space<vmem>>, vector<1x1x2x128xf32>,
    %c0_23 = arith.constant 0 : index
    %c1_24 = arith.constant 1 : index
    %c0_25 = arith.constant 0 : index
    %c0_26 = arith.constant 0 : index
    %29 = vector.load %arg6[%c0_23, %c1_24, %c0_25, %c0_26] : memref<1x4x2x128xf32, #tpu.memory_space<vmem>>, vector<1x1x2x128xf32>
    %30 = vector.shape_cast %29 : vector<1x1x2x128xf32> to vector<2x128xf32>
    %31 = vector.shape_cast %12 : vector<2x128xf32> to vector<1x2x128xf32>
    %cst_27 = arith.constant dense<0.000000e+00> : vector<2x128xf32>
    %32 = vector.multi_reduction <add>, %31, %cst_27 [0] : vector<1x2x128xf32> to vector<2x128xf32>
    %33 = arith.addf %30, %32 : vector<2x128xf32>
    %c0_28 = arith.constant 0 : index
    %c1_29 = arith.constant 1 : index
    %c0_30 = arith.constant 0 : index
    %c0_31 = arith.constant 0 : index
    %34 = vector.load %arg6[%c0_28, %c1_29, %c0_30, %c0_31] : memref<1x4x2x128xf32, #tpu.memory_space<vmem>>, vector<1x1x2x128xf32>
    %35 = vector.shape_cast %34 : vector<1x1x2x128xf32> to vector<2x128xf32>
    %36 = vector.shape_cast %33 : vector<2x128xf32> to vector<1x1x2x128xf32>
    tpu.vector_store %arg6[%c0_28, %c1_29, %c0_30, %c0_31], %36 {strides = array<i32>} : memref<1x4x2x128xf32, #tpu.memory_space<vmem>>, vector<1x1x2x128xf32>,
    %c0_32 = arith.constant 0 : index
    %c2 = arith.constant 2 : index
    %c0_33 = arith.constant 0 : index
    %c0_34 = arith.constant 0 : index
    %37 = vector.load %arg2[%c0_32, %c2, %c0_33, %c0_34] : memref<1x4x2x128xf32, #tpu.memory_space<vmem>>, vector<1x1x2x128xf32>
    %38 = vector.shape_cast %37 : vector<1x1x2x128xf32> to vector<2x128xf32>
    %39 = math.exp %38 : vector<2x128xf32>
    %c2_i32 = arith.constant 2 : i32
    %40 = vector.broadcast %c2_i32 : i32 to vector<2x128xi32>
    %41 = arith.cmpi eq, %4, %40 : vector<2x128xi32>
    %42 = arith.extui %41 : vector<2x128xi1> to vector<2x128xi32>
    %43 = arith.sitofp %42 : vector<2x128xi32> to vector<2x128xf32>
    %44 = arith.mulf %39, %43 : vector<2x128xf32>
    %c0_35 = arith.constant 0 : index
    %c2_36 = arith.constant 2 : index
    %c0_37 = arith.constant 0 : index
    %c0_38 = arith.constant 0 : index
    %45 = vector.load %arg4[%c0_35, %c2_36, %c0_37, %c0_38] : memref<1x4x2x128xf32, #tpu.memory_space<vmem>>, vector<1x1x2x128xf32>
    %46 = vector.shape_cast %45 : vector<1x1x2x128xf32> to vector<2x128xf32>
    %47 = vector.shape_cast %39 : vector<2x128xf32> to vector<1x2x128xf32>
    %cst_39 = arith.constant dense<0.000000e+00> : vector<2x128xf32>
    %48 = vector.multi_reduction <add>, %47, %cst_39 [0] : vector<1x2x128xf32> to vector<2x128xf32>
    %49 = arith.addf %46, %48 : vector<2x128xf32>
    %c0_40 = arith.constant 0 : index
    %c2_41 = arith.constant 2 : index
    %c0_42 = arith.constant 0 : index
    %c0_43 = arith.constant 0 : index
    %50 = vector.load %arg4[%c0_40, %c2_41, %c0_42, %c0_43] : memref<1x4x2x128xf32, #tpu.memory_space<vmem>>, vector<1x1x2x128xf32>
    %51 = vector.shape_cast %50 : vector<1x1x2x128xf32> to vector<2x128xf32>
    %52 = vector.shape_cast %49 : vector<2x128xf32> to vector<1x1x2x128xf32>
    tpu.vector_store %arg4[%c0_40, %c2_41, %c0_42, %c0_43], %52 {strides = array<i32>} : memref<1x4x2x128xf32, #tpu.memory_space<vmem>>, vector<1x1x2x128xf32>,
    %c0_44 = arith.constant 0 : index
    %c2_45 = arith.constant 2 : index
    %c0_46 = arith.constant 0 : index
    %c0_47 = arith.constant 0 : index
    %53 = vector.load %arg5[%c0_44, %c2_45, %c0_46, %c0_47] : memref<1x4x2x128xf32, #tpu.memory_space<vmem>>, vector<1x1x2x128xf32>
    %54 = vector.shape_cast %53 : vector<1x1x2x128xf32> to vector<2x128xf32>
    %55 = vector.shape_cast %43 : vector<2x128xf32> to vector<1x2x128xf32>
    %cst_48 = arith.constant dense<0.000000e+00> : vector<2x128xf32>
    %56 = vector.multi_reduction <add>, %55, %cst_48 [0] : vector<1x2x128xf32> to vector<2x128xf32>
    %57 = arith.addf %54, %56 : vector<2x128xf32>
    %c0_49 = arith.constant 0 : index
    %c2_50 = arith.constant 2 : index
    %c0_51 = arith.constant 0 : index
    %c0_52 = arith.constant 0 : index
    %58 = vector.load %arg5[%c0_49, %c2_50, %c0_51, %c0_52] : memref<1x4x2x128xf32, #tpu.memory_space<vmem>>, vector<1x1x2x128xf32>
    %59 = vector.shape_cast %58 : vector<1x1x2x128xf32> to vector<2x128xf32>
    %60 = vector.shape_cast %57 : vector<2x128xf32> to vector<1x1x2x128xf32>
    tpu.vector_store %arg5[%c0_49, %c2_50, %c0_51, %c0_52], %60 {strides = array<i32>} : memref<1x4x2x128xf32, #tpu.memory_space<vmem>>, vector<1x1x2x128xf32>,
    %c0_53 = arith.constant 0 : index
    %c2_54 = arith.constant 2 : index
    %c0_55 = arith.constant 0 : index
    %c0_56 = arith.constant 0 : index
    %61 = vector.load %arg6[%c0_53, %c2_54, %c0_55, %c0_56] : memref<1x4x2x128xf32, #tpu.memory_space<vmem>>, vector<1x1x2x128xf32>
    %62 = vector.shape_cast %61 : vector<1x1x2x128xf32> to vector<2x128xf32>
    %63 = vector.shape_cast %44 : vector<2x128xf32> to vector<1x2x128xf32>
    %cst_57 = arith.constant dense<0.000000e+00> : vector<2x128xf32>
    %64 = vector.multi_reduction <add>, %63, %cst_57 [0] : vector<1x2x128xf32> to vector<2x128xf32>
    %65 = arith.addf %62, %64 : vector<2x128xf32>
    %c0_58 = arith.constant 0 : index
    %c2_59 = arith.constant 2 : index
    %c0_60 = arith.constant 0 : index
    %c0_61 = arith.constant 0 : index
    %66 = vector.load %arg6[%c0_58, %c2_59, %c0_60, %c0_61] : memref<1x4x2x128xf32, #tpu.memory_space<vmem>>, vector<1x1x2x128xf32>
    %67 = vector.shape_cast %66 : vector<1x1x2x128xf32> to vector<2x128xf32>
    %68 = vector.shape_cast %65 : vector<2x128xf32> to vector<1x1x2x128xf32>
    tpu.vector_store %arg6[%c0_58, %c2_59, %c0_60, %c0_61], %68 {strides = array<i32>} : memref<1x4x2x128xf32, #tpu.memory_space<vmem>>, vector<1x1x2x128xf32>,
    %c0_62 = arith.constant 0 : index
    %c3 = arith.constant 3 : index
    %c0_63 = arith.constant 0 : index
    %c0_64 = arith.constant 0 : index
    %69 = vector.load %arg2[%c0_62, %c3, %c0_63, %c0_64] : memref<1x4x2x128xf32, #tpu.memory_space<vmem>>, vector<1x1x2x128xf32>
    %70 = vector.shape_cast %69 : vector<1x1x2x128xf32> to vector<2x128xf32>
    %71 = math.exp %70 : vector<2x128xf32>
    %c3_i32 = arith.constant 3 : i32
    %72 = vector.broadcast %c3_i32 : i32 to vector<2x128xi32>
    %73 = arith.cmpi eq, %4, %72 : vector<2x128xi32>
    %74 = arith.extui %73 : vector<2x128xi1> to vector<2x128xi32>
    %75 = arith.sitofp %74 : vector<2x128xi32> to vector<2x128xf32>
    %76 = arith.mulf %71, %75 : vector<2x128xf32>
    %c0_65 = arith.constant 0 : index
    %c3_66 = arith.constant 3 : index
    %c0_67 = arith.constant 0 : index
    %c0_68 = arith.constant 0 : index
    %77 = vector.load %arg4[%c0_65, %c3_66, %c0_67, %c0_68] : memref<1x4x2x128xf32, #tpu.memory_space<vmem>>, vector<1x1x2x128xf32>
    %78 = vector.shape_cast %77 : vector<1x1x2x128xf32> to vector<2x128xf32>
    %79 = vector.shape_cast %71 : vector<2x128xf32> to vector<1x2x128xf32>
    %cst_69 = arith.constant dense<0.000000e+00> : vector<2x128xf32>
    %80 = vector.multi_reduction <add>, %79, %cst_69 [0] : vector<1x2x128xf32> to vector<2x128xf32>
    %81 = arith.addf %78, %80 : vector<2x128xf32>
    %c0_70 = arith.constant 0 : index
    %c3_71 = arith.constant 3 : index
    %c0_72 = arith.constant 0 : index
    %c0_73 = arith.constant 0 : index
    %82 = vector.load %arg4[%c0_70, %c3_71, %c0_72, %c0_73] : memref<1x4x2x128xf32, #tpu.memory_space<vmem>>, vector<1x1x2x128xf32>
    %83 = vector.shape_cast %82 : vector<1x1x2x128xf32> to vector<2x128xf32>
    %84 = vector.shape_cast %81 : vector<2x128xf32> to vector<1x1x2x128xf32>
    tpu.vector_store %arg4[%c0_70, %c3_71, %c0_72, %c0_73], %84 {strides = array<i32>} : memref<1x4x2x128xf32, #tpu.memory_space<vmem>>, vector<1x1x2x128xf32>,
    %c0_74 = arith.constant 0 : index
    %c3_75 = arith.constant 3 : index
    %c0_76 = arith.constant 0 : index
    %c0_77 = arith.constant 0 : index
    %85 = vector.load %arg5[%c0_74, %c3_75, %c0_76, %c0_77] : memref<1x4x2x128xf32, #tpu.memory_space<vmem>>, vector<1x1x2x128xf32>
    %86 = vector.shape_cast %85 : vector<1x1x2x128xf32> to vector<2x128xf32>
    %87 = vector.shape_cast %75 : vector<2x128xf32> to vector<1x2x128xf32>
    %cst_78 = arith.constant dense<0.000000e+00> : vector<2x128xf32>
    %88 = vector.multi_reduction <add>, %87, %cst_78 [0] : vector<1x2x128xf32> to vector<2x128xf32>
    %89 = arith.addf %86, %88 : vector<2x128xf32>
    %c0_79 = arith.constant 0 : index
    %c3_80 = arith.constant 3 : index
    %c0_81 = arith.constant 0 : index
    %c0_82 = arith.constant 0 : index
    %90 = vector.load %arg5[%c0_79, %c3_80, %c0_81, %c0_82] : memref<1x4x2x128xf32, #tpu.memory_space<vmem>>, vector<1x1x2x128xf32>
    %91 = vector.shape_cast %90 : vector<1x1x2x128xf32> to vector<2x128xf32>
    %92 = vector.shape_cast %89 : vector<2x128xf32> to vector<1x1x2x128xf32>
    tpu.vector_store %arg5[%c0_79, %c3_80, %c0_81, %c0_82], %92 {strides = array<i32>} : memref<1x4x2x128xf32, #tpu.memory_space<vmem>>, vector<1x1x2x128xf32>,
    %c0_83 = arith.constant 0 : index
    %c3_84 = arith.constant 3 : index
    %c0_85 = arith.constant 0 : index
    %c0_86 = arith.constant 0 : index
    %93 = vector.load %arg6[%c0_83, %c3_84, %c0_85, %c0_86] : memref<1x4x2x128xf32, #tpu.memory_space<vmem>>, vector<1x1x2x128xf32>
    %94 = vector.shape_cast %93 : vector<1x1x2x128xf32> to vector<2x128xf32>
    %95 = vector.shape_cast %76 : vector<2x128xf32> to vector<1x2x128xf32>
    %cst_87 = arith.constant dense<0.000000e+00> : vector<2x128xf32>
    %96 = vector.multi_reduction <add>, %95, %cst_87 [0] : vector<1x2x128xf32> to vector<2x128xf32>
    %97 = arith.addf %94, %96 : vector<2x128xf32>
    %c0_88 = arith.constant 0 : index
    %c3_89 = arith.constant 3 : index
    %c0_90 = arith.constant 0 : index
    %c0_91 = arith.constant 0 : index
    %98 = vector.load %arg6[%c0_88, %c3_89, %c0_90, %c0_91] : memref<1x4x2x128xf32, #tpu.memory_space<vmem>>, vector<1x1x2x128xf32>
    %99 = vector.shape_cast %98 : vector<1x1x2x128xf32> to vector<2x128xf32>
    %100 = vector.shape_cast %97 : vector<2x128xf32> to vector<1x1x2x128xf32>
    tpu.vector_store %arg6[%c0_88, %c3_89, %c0_90, %c0_91], %100 {strides = array<i32>} : memref<1x4x2x128xf32, #tpu.memory_space<vmem>>, vector<1x1x2x128xf32>,
    return
  }
  func.func @transform_0(%arg0: i32, %arg1: i32) -> (i32, i32, i32, i32) {
    %c0_i32 = arith.constant 0 : i32
    %c0_i32_0 = arith.constant 0 : i32
    %c0_i32_1 = arith.constant 0 : i32
    return %arg0, %c0_i32, %arg1, %c0_i32_0 : i32, i32, i32, i32
  }
  func.func @transform_1(%arg0: i32, %arg1: i32) -> (i32, i32, i32) {
    %c0_i32 = arith.constant 0 : i32
    %c0_i32_0 = arith.constant 0 : i32
    return %arg0, %arg1, %c0_i32 : i32, i32, i32
  }
  func.func @transform_2(%arg0: i32, %arg1: i32) -> (i32, i32, i32, i32) {
    %c0_i32 = arith.constant 0 : i32
    %c0_i32_0 = arith.constant 0 : i32
    %c0_i32_1 = arith.constant 0 : i32
    %c0_i32_2 = arith.constant 0 : i32
    return %arg0, %c0_i32, %c0_i32_0, %c0_i32_1 : i32, i32, i32, i32
  }
  func.func @transform_3(%arg0: i32, %arg1: i32) -> (i32, i32, i32, i32) {
    %c0_i32 = arith.constant 0 : i32
    %c0_i32_0 = arith.constant 0 : i32
    %c0_i32_1 = arith.constant 0 : i32
    %c0_i32_2 = arith.constant 0 : i32
    return %arg0, %c0_i32, %c0_i32_0, %c0_i32_1 : i32, i32, i32, i32
  }
  func.func @transform_4(%arg0: i32, %arg1: i32) -> (i32, i32, i32, i32) {
    %c0_i32 = arith.constant 0 : i32
    %c0_i32_0 = arith.constant 0 : i32
    %c0_i32_1 = arith.constant 0 : i32
    %c0_i32_2 = arith.constant 0 : i32
    return %arg0, %c0_i32, %c0_i32_0, %c0_i32_1 : i32, i32, i32, i32
  }
}

</mosaic_0001>

<llo_original>
// kernel: tpu_custom_call.1
$region0: #{tpu_custom_call.1}
  #allocation0 [shape = 'u32[]', space=smem, size = 0x4, offset = 0x4, fixed_abs, tag = 'smem constant byte address 0x4 - core index']
  #allocation1 [shape = 'u32[72,128]{1,0:T(1,128)}', space=vmem, size = 0x9000, scoped, tag = 'internal scratch']
  %s0 = inlined_call_operand.hbm [shape: f32[2,4,2,128], index: 0, kind: input, shape index: {}]
  %s1 = inlined_call_operand.hbm [shape: s32[2,2,128], index: 1, kind: input, shape index: {}]
  %s2 = inlined_call_operand.hbm [shape: f32[2,4,2,128], index: 2, kind: output, shape index: {0}]
  %s3 = inlined_call_operand.hbm [shape: f32[2,4,2,128], index: 3, kind: output, shape index: {1}]
  %s4 = inlined_call_operand.hbm [shape: f32[2,4,2,128], index: 4, kind: output, shape index: {2}]
  %5 = xla_tuple %s2, %s3, %s4
  %s6 = sld [smem:[#allocation0]]
  $region69: #{tpu_custom_call.1} parent=0
    _
  %s8 = ssub.s32 1, %s6
  %s9 = scalar_select 0, %s8, %s6
  $region1: #{tpu_custom_call.1} parent=0
    #allocation2 [shape = 'u8[8192]{0}', space=vmem, size = 0x2000, scoped, tag = 'input window, operand 0']
    #allocation3 [shape = 's32[2]{0}', space=sflag, size = 0x8, scoped, tag = 'scoped memory for tpu_custom_call.1']
    #allocation4 [shape = 's32[2]{0}', space=sflag, size = 0x8, scoped, tag = 'scoped memory for tpu_custom_call.1']
    #allocation5 [shape = 'u8[2048]{0}', space=vmem, size = 0x800, scoped, tag = 'input window, operand 1']
    #allocation6 [shape = 's32[2]{0}', space=sflag, size = 0x8, scoped, tag = 'scoped memory for tpu_custom_call.1']
    #allocation7 [shape = 'u8[8192]{0}', space=vmem, size = 0x2000, scoped, tag = 'output window, operand 0']
    #allocation8 [shape = 'u8[8192]{0}', space=vmem, size = 0x2000, scoped, tag = 'output window, operand 1']
    #allocation9 [shape = 's32[2]{0}', space=sflag, size = 0x8, scoped, tag = 'scoped memory for tpu_custom_call.1']
    #allocation10 [shape = 'u8[8192]{0}', space=vmem, size = 0x2000, scoped, tag = 'output window, operand 2']
    %10 = vsyncpa [#allocation3], 0
    %s11 = scalar_lea.sflag [#allocation3], 1
    %12 = vsyncpa %s11, 0
    %13 = vsyncpa [#allocation6], 0
    %s14 = scalar_lea.sflag [#allocation6], 1
    %15 = vsyncpa %s14, 0
    %16 = vsyncpa [#allocation4], 0
    %s17 = scalar_lea.sflag [#allocation4], 1
    %18 = vsyncpa %s17, 0
    %19 = vsyncpa [#allocation9], 0
    %s20 = scalar_lea.sflag [#allocation9], 1
    %21 = vsyncpa %s20, 0
    loop: start=0, step=1, limit=4
    $region2: #{tpu_custom_call.1} parent=1 // loop_pre_header
      _
    $region3: #{tpu_custom_call.1} parent=1 // loop_header
      %s23 = sphi 0, %s27
      %p24 = scmp.ge.s32.totalorder %s23, 4
      %s30 = sphi 0, %s42
      %s31 = sphi 0, %s38
      %s32 = sphi 0, %s30
      %s33 = sphi 0, %s31
      %s34 = sphi 0, %s32
      %s35 = sphi 0, %s33
      %s47 = sphi 0, %s49
      %s50 = sphi 0, %s47
      %s51 = sphi 0, %s50
      %s67 = sphi 0, %s51
      %s75 = sphi 0, %s77
      %s78 = sphi 0, %s75
      %s79 = sphi 0, %s78
      %s95 = sphi 0, %s79
      %s101 = sphi 0, %s103
      %s104 = sphi 0, %s101
      %s105 = sphi 0, %s104
      %s121 = sphi 0, %s105
      %s127 = sphi 0, %s129
      %s130 = sphi 0, %s127
      %s131 = sphi 0, %s130
      %s147 = sphi 0, %s131
      %s153 = sphi 0, %s155
      %s156 = sphi 0, %s153
      %s157 = sphi 0, %s156
      %s173 = sphi 0, %s157
    $region4: #{tpu_custom_call.1} parent=1 // loop_header_branch
      %26 = sbr.rel (%p24) target = $region8
    $region5: #{tpu_custom_call.1} parent=1 // loop_body
      %s28 = ssub.s32 %s23, 1
      %s29 = ssub.s32 %s23, 2
      %s36 = sadd.s32 1, %s31
      %p37 = scmp.ge.s32.totalorder %s36, 1
      %s38 = scalar_select %p37, 0, %s36
      %s39 = sadd.s32 1, %s30
      %s40 = scalar_select %p37, %s39, %s30
      %p41 = scmp.ge.s32.totalorder %s40, 2
      %s42 = scalar_select %p41, 0, %s40
      %s43 = ssub.s32 %s30, %s42
      %s44 = ssub.s32 %s31, %s38
      %s45 = sor.u32 %s43, %s44
      %p46 = scmp.eq.s32.totalorder %s45, 0
      %s48 = sadd.s32 %s47, 1
      %s49 = scalar_select %p46, %s47, %s48
      %p52 = pneg %p46
      %p53 = scmp.eq.s32.totalorder %s23, 1
      %p54 = por %p52, %p53
      %p55 = scmp.ne.s32.totalorder %s47, %s50
      %p56 = scmp.eq.s32.totalorder %s23, 0
      %p57 = por %p55, %p56
      %p58 = scmp.ne.s32.totalorder %s47, %s50
      %p59 = scmp.eq.s32.totalorder %s28, 1
      %p60 = por %p58, %p59
      %p61 = scmp.ne.s32.totalorder %s50, %s51
      %p62 = scmp.eq.s32.totalorder %s28, 0
      %p63 = por %p61, %p62
      %p64 = scmp.ne.s32.totalorder %s50, %s51
      %p65 = scmp.eq.s32.totalorder %s29, 1
      %p66 = por %p64, %p65
      %p68 = scmp.ne.s32.totalorder %s51, %s67
      %p69 = scmp.eq.s32.totalorder %s29, 0
      %p70 = por %p68, %p69
      %s71 = ssub.s32 %s30, %s42
      %s72 = ssub.s32 %s31, %s38
      %s73 = sor.u32 %s71, %s72
      %p74 = scmp.eq.s32.totalorder %s73, 0
      %s76 = sadd.s32 %s75, 1
      %s77 = scalar_select %p74, %s75, %s76
      %p80 = pneg %p74
      %p81 = scmp.eq.s32.totalorder %s23, 1
      %p82 = por %p80, %p81
      %p83 = scmp.ne.s32.totalorder %s75, %s78
      %p84 = scmp.eq.s32.totalorder %s23, 0
      %p85 = por %p83, %p84
      %p86 = scmp.ne.s32.totalorder %s75, %s78
      %p87 = scmp.eq.s32.totalorder %s28, 1
      %p88 = por %p86, %p87
      %p89 = scmp.ne.s32.totalorder %s78, %s79
      %p90 = scmp.eq.s32.totalorder %s28, 0
      %p91 = por %p89, %p90
      %p92 = scmp.ne.s32.totalorder %s78, %s79
      %p93 = scmp.eq.s32.totalorder %s29, 1
      %p94 = por %p92, %p93
      %p96 = scmp.ne.s32.totalorder %s79, %s95
      %p97 = scmp.eq.s32.totalorder %s29, 0
      %p98 = por %p96, %p97
      %s99 = ssub.s32 %s30, %s42
      %p100 = scmp.eq.s32.totalorder %s99, 0
      %s102 = sadd.s32 %s101, 1
      %s103 = scalar_select %p100, %s101, %s102
      %p106 = pneg %p100
      %p107 = scmp.eq.s32.totalorder %s23, 1
      %p108 = por %p106, %p107
      %p109 = scmp.ne.s32.totalorder %s101, %s104
      %p110 = scmp.eq.s32.totalorder %s23, 0
      %p111 = por %p109, %p110
      %p112 = scmp.ne.s32.totalorder %s101, %s104
      %p113 = scmp.eq.s32.totalorder %s28, 1
      %p114 = por %p112, %p113
      %p115 = scmp.ne.s32.totalorder %s104, %s105
      %p116 = scmp.eq.s32.totalorder %s28, 0
      %p117 = por %p115, %p116
      %p118 = scmp.ne.s32.totalorder %s104, %s105
      %p119 = scmp.eq.s32.totalorder %s29, 1
      %p120 = por %p118, %p119
      %p122 = scmp.ne.s32.totalorder %s105, %s121
      %p123 = scmp.eq.s32.totalorder %s29, 0
      %p124 = por %p122, %p123
      %s125 = ssub.s32 %s30, %s42
      %p126 = scmp.eq.s32.totalorder %s125, 0
      %s128 = sadd.s32 %s127, 1
      %s129 = scalar_select %p126, %s127, %s128
      %p132 = pneg %p126
      %p133 = scmp.eq.s32.totalorder %s23, 1
      %p134 = por %p132, %p133
      %p135 = scmp.ne.s32.totalorder %s127, %s130
      %p136 = scmp.eq.s32.totalorder %s23, 0
      %p137 = por %p135, %p136
      %p138 = scmp.ne.s32.totalorder %s127, %s130
      %p139 = scmp.eq.s32.totalorder %s28, 1
      %p140 = por %p138, %p139
      %p141 = scmp.ne.s32.totalorder %s130, %s131
      %p142 = scmp.eq.s32.totalorder %s28, 0
      %p143 = por %p141, %p142
      %p144 = scmp.ne.s32.totalorder %s130, %s131
      %p145 = scmp.eq.s32.totalorder %s29, 1
      %p146 = por %p144, %p145
      %p148 = scmp.ne.s32.totalorder %s131, %s147
      %p149 = scmp.eq.s32.totalorder %s29, 0
      %p150 = por %p148, %p149
      %s151 = ssub.s32 %s30, %s42
      %p152 = scmp.eq.s32.totalorder %s151, 0
      %s154 = sadd.s32 %s153, 1
      %s155 = scalar_select %p152, %s153, %s154
      %p158 = pneg %p152
      %p159 = scmp.eq.s32.totalorder %s23, 1
      %p160 = por %p158, %p159
      %p161 = scmp.ne.s32.totalorder %s153, %s156
      %p162 = scmp.eq.s32.totalorder %s23, 0
      %p163 = por %p161, %p162
      %p164 = scmp.ne.s32.totalorder %s153, %s156
      %p165 = scmp.eq.s32.totalorder %s28, 1
      %p166 = por %p164, %p165
      %p167 = scmp.ne.s32.totalorder %s156, %s157
      %p168 = scmp.eq.s32.totalorder %s28, 0
      %p169 = por %p167, %p168
      %p170 = scmp.ne.s32.totalorder %s156, %s157
      %p171 = scmp.eq.s32.totalorder %s29, 1
      %p172 = por %p170, %p171
      %p174 = scmp.ne.s32.totalorder %s157, %s173
      %p175 = scmp.eq.s32.totalorder %s29, 0
      %p176 = por %p174, %p175
      %p177 = scmp.le.s32.totalorder 1, %s23
      %p178 = scmp.lt.s32.totalorder %s23, 3
      %p179 = pnand %p177, %p178
      %p180 = pneg %p179
      // Predicated region
      $region9: #{tpu_custom_call.1} parent=5 // pred_check
        _
      $region10: #{tpu_custom_call.1} parent=5 // pred_check_branch
        %182 = sbr.rel (%p179) target = $region12
      $region11: #{tpu_custom_call.1} parent=5 // pred_region
        %s183 = ssub.s32 %s23, 1
      $region12: #{tpu_custom_call.1} parent=5 // pred_fallthru
        _
      %p184 = scmp.lt.s32.totalorder %s23, 2
      // Predicated region
      $region13: #{tpu_custom_call.1} parent=5 // pred_check
        %p185 = pneg %p184
      $region14: #{tpu_custom_call.1} parent=5 // pred_check_branch
        %187 = sbr.rel (%p185) target = $region16
      $region15: #{tpu_custom_call.1} parent=5 // pred_region
        // Predicated region
        $region17: #{tpu_custom_call.1} parent=15 // pred_check
          %p188 = pneg %p57
        $region18: #{tpu_custom_call.1} parent=15 // pred_check_branch
          %190 = sbr.rel (%p188) target = $region20
        $region19: #{tpu_custom_call.1} parent=15 // pred_region
          %s191 = sand.u32 %s47, 1
          %s192 = scalar_lea.sflag [#allocation3], %s191
          %s193 = sand.u32 %s47, 1
          %s194 = smul.addr %s193, 8
          %s195 = scalar_lea.vmem [#allocation2], %s194
          %197 = vsyncadd %s192, 0
          %s198 = smul.addr %s30, 4
          %s199 = sadd.s32 %s31, %s198
          %s200 = smul.addr %s199, 2
          %s201 = scalar_lea.hbm %s0, %s200
          %s202 = sshll.u32 %s201, 4
          %s203 = int_to_ptr.hbm [resolvable:$true] %s202
          %s204 = sshll.u32 %s195, 4
          %s205 = int_to_ptr.vmem [resolvable:$true] %s204
          %210 = dma.hbm_to_vmem [thread:$0]  %s203, 128, %s205, %s192, 32, 32, 2
        $region20: #{tpu_custom_call.1} parent=15 // pred_fallthru
          _
        // Predicated region
        $region21: #{tpu_custom_call.1} parent=15 // pred_check
          %p211 = pneg %p85
        $region22: #{tpu_custom_call.1} parent=15 // pred_check_branch
          %213 = sbr.rel (%p211) target = $region24
        $region23: #{tpu_custom_call.1} parent=15 // pred_region
          %s214 = sand.u32 %s75, 1
          %s215 = scalar_lea.sflag [#allocation6], %s214
          %s216 = sand.u32 %s75, 1
          %s217 = smul.addr %s216, 2
          %s218 = scalar_lea.vmem [#allocation5], %s217
          %220 = vsyncadd %s215, 0
          %s221 = sadd.s32 %s31, %s30
          %s222 = smul.addr %s221, 2
          %s223 = scalar_lea.hbm %s1, %s222
          %s225 = sshll.u32 %s223, 4
          %s226 = int_to_ptr.hbm [resolvable:$true] %s225
          %s227 = sshll.u32 %s218, 4
          %s228 = int_to_ptr.vmem [resolvable:$true] %s227
          %230 = dma.hbm_to_vmem [thread:$0]  %s226, 32, %s228, %s215
        $region24: #{tpu_custom_call.1} parent=15 // pred_fallthru
          _
      $region16: #{tpu_custom_call.1} parent=5 // pred_fallthru
        _
      %p231 = scmp.le.s32.totalorder 1, %s23
      %p232 = scmp.lt.s32.totalorder %s23, 3
      %p233 = pnand %p231, %p232
      %p234 = pneg %p233
      // Predicated region
      $region25: #{tpu_custom_call.1} parent=5 // pred_check
        _
      $region26: #{tpu_custom_call.1} parent=5 // pred_check_branch
        %236 = sbr.rel (%p233) target = $region28
      $region27: #{tpu_custom_call.1} parent=5 // pred_region
        %s237 = ssub.s32 %s23, 1
        %s238 = sand.u32 %s50, 1
        %s239 = scalar_lea.sflag [#allocation3], %s238
        %s240 = sand.u32 %s50, 1
        %s241 = smul.addr %s240, 8
        %s242 = scalar_lea.vmem [#allocation2], %s241
        // Predicated region
        $region29: #{tpu_custom_call.1} parent=27 // pred_check
          %p243 = pneg %p63
        $region30: #{tpu_custom_call.1} parent=27 // pred_check_branch
          %245 = sbr.rel (%p243) target = $region32
        $region31: #{tpu_custom_call.1} parent=27 // pred_region
          %247 = dma.done %s239, 128
        $region32: #{tpu_custom_call.1} parent=27 // pred_fallthru
          _
        %s248 = sand.u32 %s78, 1
        %s249 = scalar_lea.sflag [#allocation6], %s248
        %s250 = sand.u32 %s78, 1
        %s251 = smul.addr %s250, 2
        %s252 = scalar_lea.vmem [#allocation5], %s251
        // Predicated region
        $region33: #{tpu_custom_call.1} parent=27 // pred_check
          %p253 = pneg %p91
        $region34: #{tpu_custom_call.1} parent=27 // pred_check_branch
          %255 = sbr.rel (%p253) target = $region36
        $region35: #{tpu_custom_call.1} parent=27 // pred_region
          %257 = dma.done %s249, 32
        $region36: #{tpu_custom_call.1} parent=27 // pred_fallthru
          _
        %s258 = sand.u32 %s50, 1
        %s259 = scalar_lea.sflag [#allocation3], %s258
        %s260 = sand.u32 %s50, 1
        %s261 = smul.addr %s260, 8
        %s262 = scalar_lea.vmem [#allocation2], %s261
        %p263 = pneg %p63
        %p264 = pneg %p60
        %s265 = sand.u32 %s78, 1
        %s266 = scalar_lea.sflag [#allocation6], %s265
        %s267 = sand.u32 %s78, 1
        %s268 = smul.addr %s267, 2
        %s269 = scalar_lea.vmem [#allocation5], %s268
        %p270 = pneg %p91
        %p271 = pneg %p88
        %p272 = pneg %p117
        %p273 = pneg %p114
        %s274 = sand.u32 %s104, 1
        %s275 = scalar_lea.sflag [#allocation4], %s274
        %s276 = sand.u32 %s104, 1
        %s277 = smul.addr %s276, 8
        %s278 = scalar_lea.vmem [#allocation7], %s277
        %p279 = pneg %p143
        %p280 = pneg %p140
        %s281 = sand.u32 %s28, 1
        %s282 = scalar_lea.sflag [#allocation9], %s281
        %s283 = sand.u32 %s130, 1
        %s284 = smul.addr %s283, 8
        %s285 = scalar_lea.vmem [#allocation8], %s284
        %p286 = pneg %p169
        %p287 = pneg %p166
        %s288 = sand.u32 %s28, 1
        %s289 = scalar_lea.sflag [#allocation9], %s288
        %s290 = sand.u32 %s156, 1
        %s291 = smul.addr %s290, 8
        %s292 = scalar_lea.vmem [#allocation10], %s291
        %p293 = scmp.eq.s32.totalorder %s33, 0
        // Predicated region
        $region37: #{tpu_custom_call.1} parent=27 // pred_check
          %p294 = pneg %p293
        $region38: #{tpu_custom_call.1} parent=27 // pred_check_branch
          %296 = sbr.rel (%p294) target = $region40
        $region39: #{tpu_custom_call.1} parent=27 // pred_region
          %297 = vst [vmem:[%s278] sm:$0x3] 0.0
          %298 = vst [vmem:[%s278 + $0x2] sm:$0x3] 0.0
          %299 = vst [vmem:[%s278 + $0x4] sm:$0x3] 0.0
          %300 = vst [vmem:[%s278 + $0x6] sm:$0x3] 0.0
          %301 = vst [vmem:[%s285] sm:$0x3] 0.0
          %302 = vst [vmem:[%s285 + $0x2] sm:$0x3] 0.0
          %303 = vst [vmem:[%s285 + $0x4] sm:$0x3] 0.0
          %304 = vst [vmem:[%s285 + $0x6] sm:$0x3] 0.0
          %305 = vst [vmem:[%s292] sm:$0x3] 0.0
          %306 = vst [vmem:[%s292 + $0x2] sm:$0x3] 0.0
          %307 = vst [vmem:[%s292 + $0x4] sm:$0x3] 0.0
          %308 = vst [vmem:[%s292 + $0x6] sm:$0x3] 0.0
        $region40: #{tpu_custom_call.1} parent=27 // pred_fallthru
          _
        %v309 = vld [vmem:[%s252] sm:$0x3]
        %s310 = scalar_lea.vmem %s242, 2 [#allocation2]
        %v311 = vld [vmem:[%s310] sm:$0x3]
        %v312 = vmul.f32 %v311, 1.442695
        %v313 = vpow.pop %v312
        %vm314 = vcmp.eq.s32.totalorder %v309, 1
        %v315 = vsel %vm314, 1, 0
        %v316 = vcvt.s32.f32 %v315
        %v317 = vmul.f32 %v313, %v316
        %s318 = scalar_lea.vmem %s278, 2 [#allocation7]
        %v319 = vld [vmem:[%s318] sm:$0x3]
        %v320 = vadd.f32 %v313, 0.0
        %v321 = vadd.f32 %v319, %v320
        %322 = vst [vmem:[%s318] sm:$0x3] %v321
        %s323 = scalar_lea.vmem %s285, 2 [#allocation8]
        %v324 = vld [vmem:[%s323] sm:$0x3]
        %v325 = vadd.f32 %v316, 0.0
        %v326 = vadd.f32 %v324, %v325
        %327 = vst [vmem:[%s323] sm:$0x3] %v326
        %s328 = scalar_lea.vmem %s292, 2 [#allocation10]
        %v329 = vld [vmem:[%s328] sm:$0x3]
        %v330 = vadd.f32 %v317, 0.0
        %v331 = vadd.f32 %v329, %v330
        %332 = vst [vmem:[%s328] sm:$0x3] %v331
        %s333 = scalar_lea.vmem %s242, 4 [#allocation2]
        %v334 = vld [vmem:[%s333] sm:$0x3]
        %v335 = vmul.f32 %v334, 1.442695
        %v336 = vpow.pop %v335
        %vm337 = vcmp.eq.s32.totalorder %v309, 2
        %v338 = vsel %vm337, 1, 0
        %v339 = vcvt.s32.f32 %v338
        %v340 = vmul.f32 %v336, %v339
        %s341 = scalar_lea.vmem %s278, 4 [#allocation7]
        %v342 = vld [vmem:[%s341] sm:$0x3]
        %v343 = vadd.f32 %v336, 0.0
        %v344 = vadd.f32 %v342, %v343
        %345 = vst [vmem:[%s341] sm:$0x3] %v344
        %s346 = scalar_lea.vmem %s285, 4 [#allocation8]
        %v347 = vld [vmem:[%s346] sm:$0x3]
        %v348 = vadd.f32 %v339, 0.0
        %v349 = vadd.f32 %v347, %v348
        %350 = vst [vmem:[%s346] sm:$0x3] %v349
        %s351 = scalar_lea.vmem %s292, 4 [#allocation10]
        %v352 = vld [vmem:[%s351] sm:$0x3]
        %v353 = vadd.f32 %v340, 0.0
        %v354 = vadd.f32 %v352, %v353
        %355 = vst [vmem:[%s351] sm:$0x3] %v354
        %s356 = scalar_lea.vmem %s242, 6 [#allocation2]
        %v357 = vld [vmem:[%s356] sm:$0x3]
        %v358 = vmul.f32 %v357, 1.442695
        %v359 = vpow.pop %v358
        %vm360 = vcmp.eq.s32.totalorder %v309, 3
        %v361 = vsel %vm360, 1, 0
        %v362 = vcvt.s32.f32 %v361
        %v363 = vmul.f32 %v359, %v362
        %s364 = scalar_lea.vmem %s278, 6 [#allocation7]
        %v365 = vld [vmem:[%s364] sm:$0x3]
        %v366 = vadd.f32 %v359, 0.0
        %v367 = vadd.f32 %v365, %v366
        %368 = vst [vmem:[%s364] sm:$0x3] %v367
        %s369 = scalar_lea.vmem %s285, 6 [#allocation8]
        %v370 = vld [vmem:[%s369] sm:$0x3]
        %v371 = vadd.f32 %v362, 0.0
        %v372 = vadd.f32 %v370, %v371
        %373 = vst [vmem:[%s369] sm:$0x3] %v372
        %s374 = scalar_lea.vmem %s292, 6 [#allocation10]
        %v375 = vld [vmem:[%s374] sm:$0x3]
        %v376 = vadd.f32 %v363, 0.0
        %v377 = vadd.f32 %v375, %v376
        %378 = vst [vmem:[%s374] sm:$0x3] %v377
        %s379 = sand.u32 %s104, 1
        %s380 = scalar_lea.sflag [#allocation4], %s379
        %s381 = sand.u32 %s104, 1
        %s382 = smul.addr %s381, 8
        %s383 = scalar_lea.vmem [#allocation7], %s382
        %s384 = sand.u32 %s28, 1
        %s385 = scalar_lea.sflag [#allocation9], %s384
        %s386 = sand.u32 %s130, 1
        %s387 = smul.addr %s386, 8
        %s388 = scalar_lea.vmem [#allocation8], %s387
        %s389 = sand.u32 %s28, 1
        %s390 = scalar_lea.sflag [#allocation9], %s389
        %s391 = sand.u32 %s156, 1
        %s392 = smul.addr %s391, 8
        %s393 = scalar_lea.vmem [#allocation10], %s392
        // Predicated region
        $region41: #{tpu_custom_call.1} parent=27 // pred_check
          %p394 = pneg %p114
        $region42: #{tpu_custom_call.1} parent=27 // pred_check_branch
          %396 = sbr.rel (%p394) target = $region44
        $region43: #{tpu_custom_call.1} parent=27 // pred_region
          %398 = vsyncadd %s380, 0
          %s399 = smul.addr %s32, 4
          %s400 = smul.addr %s399, 2
          %s401 = scalar_lea.hbm %s2, %s400
          %s402 = sshll.u32 %s383, 4
          %s403 = int_to_ptr.vmem [resolvable:$true] %s402
          %s404 = sshll.u32 %s401, 4
          %s405 = int_to_ptr.hbm [resolvable:$true] %s404
          %410 = dma.vmem_to_hbm [thread:$0]  %s403, 128, %s405, %s380, 32, 32, 2
        $region44: #{tpu_custom_call.1} parent=27 // pred_fallthru
          _
        // Predicated region
        $region45: #{tpu_custom_call.1} parent=27 // pred_check
          %p411 = pneg %p140
        $region46: #{tpu_custom_call.1} parent=27 // pred_check_branch
          %413 = sbr.rel (%p411) target = $region48
        $region47: #{tpu_custom_call.1} parent=27 // pred_region
          %415 = vsyncadd %s385, 0
          %s416 = smul.addr %s32, 4
          %s417 = smul.addr %s416, 2
          %s418 = scalar_lea.hbm %s3, %s417
          %s419 = sshll.u32 %s388, 4
          %s420 = int_to_ptr.vmem [resolvable:$true] %s419
          %s421 = sshll.u32 %s418, 4
          %s422 = int_to_ptr.hbm [resolvable:$true] %s421
          %427 = dma.vmem_to_hbm [thread:$0]  %s420, 128, %s422, %s385, 32, 32, 2
        $region48: #{tpu_custom_call.1} parent=27 // pred_fallthru
          _
        // Predicated region
        $region49: #{tpu_custom_call.1} parent=27 // pred_check
          %p428 = pneg %p166
        $region50: #{tpu_custom_call.1} parent=27 // pred_check_branch
          %430 = sbr.rel (%p428) target = $region52
        $region51: #{tpu_custom_call.1} parent=27 // pred_region
          %432 = vsyncadd %s390, 0
          %s433 = smul.addr %s32, 4
          %s434 = smul.addr %s433, 2
          %s435 = scalar_lea.hbm %s4, %s434
          %s436 = sshll.u32 %s393, 4
          %s437 = int_to_ptr.vmem [resolvable:$true] %s436
          %s438 = sshll.u32 %s435, 4
          %s439 = int_to_ptr.hbm [resolvable:$true] %s438
          %444 = dma.vmem_to_hbm [thread:$0]  %s437, 128, %s439, %s390, 32, 32, 2
        $region52: #{tpu_custom_call.1} parent=27 // pred_fallthru
          _
      $region28: #{tpu_custom_call.1} parent=5 // pred_fallthru
        _
      %p445 = scmp.le.s32.totalorder 2, %s23
      // Predicated region
      $region53: #{tpu_custom_call.1} parent=5 // pred_check
        %p446 = pneg %p445
      $region54: #{tpu_custom_call.1} parent=5 // pred_check_branch
        %448 = sbr.rel (%p446) target = $region56
      $region55: #{tpu_custom_call.1} parent=5 // pred_region
        %s449 = ssub.s32 %s23, 2
        // Predicated region
        $region57: #{tpu_custom_call.1} parent=55 // pred_check
          %p450 = pneg %p120
        $region58: #{tpu_custom_call.1} parent=55 // pred_check_branch
          %452 = sbr.rel (%p450) target = $region60
        $region59: #{tpu_custom_call.1} parent=55 // pred_region
          %s453 = sand.u32 %s105, 1
          %s454 = scalar_lea.sflag [#allocation4], %s453
          %s455 = sand.u32 %s105, 1
          %s456 = smul.addr %s455, 8
          %s457 = scalar_lea.vmem [#allocation7], %s456
          %459 = dma.done %s454, 128
        $region60: #{tpu_custom_call.1} parent=55 // pred_fallthru
          _
        // Predicated region
        $region61: #{tpu_custom_call.1} parent=55 // pred_check
          %p460 = pneg %p146
        $region62: #{tpu_custom_call.1} parent=55 // pred_check_branch
          %462 = sbr.rel (%p460) target = $region64
        $region63: #{tpu_custom_call.1} parent=55 // pred_region
          %s463 = sand.u32 %s29, 1
          %s464 = scalar_lea.sflag [#allocation9], %s463
          %s465 = sand.u32 %s131, 1
          %s466 = smul.addr %s465, 8
          %s467 = scalar_lea.vmem [#allocation8], %s466
          %469 = dma.done %s464, 128
        $region64: #{tpu_custom_call.1} parent=55 // pred_fallthru
          _
        // Predicated region
        $region65: #{tpu_custom_call.1} parent=55 // pred_check
          %p470 = pneg %p172
        $region66: #{tpu_custom_call.1} parent=55 // pred_check_branch
          %472 = sbr.rel (%p470) target = $region68
        $region67: #{tpu_custom_call.1} parent=55 // pred_region
          %s473 = sand.u32 %s29, 1
          %s474 = scalar_lea.sflag [#allocation9], %s473
          %s475 = sand.u32 %s157, 1
          %s476 = smul.addr %s475, 8
          %s477 = scalar_lea.vmem [#allocation10], %s476
          %479 = dma.done %s474, 128
        $region68: #{tpu_custom_call.1} parent=55 // pred_fallthru
          _
      $region56: #{tpu_custom_call.1} parent=5 // pred_fallthru
        _
    $region6: #{tpu_custom_call.1} parent=1 // loop_footer
      %s27 = sadd.s32 1, %s23
    $region7: #{tpu_custom_call.1} parent=1 // loop_footer_branch
      %22 = sbr.rel target = $region3
    $region8: #{tpu_custom_call.1} parent=1 // loop_exit
      _
    %480 = vsyncpa [#allocation3], 1
    %s481 = scalar_lea.sflag [#allocation3], 1
    %482 = vsyncpa %s481, 1
    %483 = vsyncpa [#allocation6], 1
    %s484 = scalar_lea.sflag [#allocation6], 1
    %485 = vsyncpa %s484, 1
    %486 = vsyncpa [#allocation4], 1
    %s487 = scalar_lea.sflag [#allocation4], 1
    %488 = vsyncpa %s487, 1
    %489 = vsyncpa [#allocation9], 1
    %s490 = scalar_lea.sflag [#allocation9], 1
    %491 = vsyncpa %s490, 1

</llo_original>
